<compile_context>
chip_gen: v6e
topology: v6e:2x2x1
jax: 0.10.0
libtpu: 0.0.40
codegen_flags: <defaults>
</compile_context>

<pallas_src>
import jax
import jax.numpy as jnp
import numpy as np
from jax.experimental import pallas as pl
from jax.experimental.pallas import tpu as pltpu


def _rgb2lab_kernel(x_ref, o_ref):
    # x_ref / o_ref: (1, 3, TILE_ROWS, TILE_COLS) float32; channel c is a dense slab.
    r = x_ref[0, 0]
    g = x_ref[0, 1]
    b = x_ref[0, 2]

    # --- sRGB -> linear RGB (single vselect per channel) ---------------------
    def srgb_to_linear(x):
        gamma = jnp.power((jnp.maximum(x, 0.0001) + 0.055) * (1.0 / 1.055), 2.4)
        return jnp.where(x <= 0.04045, x * (1.0 / 12.92), gamma)

    rl = srgb_to_linear(r)
    gl = srgb_to_linear(g)
    bl = srgb_to_linear(b)

    # --- linear RGB -> XYZ (3x3 mix on the VPU), white point folded in -------
    inv_wx = 1.0 / 0.950456
    inv_wz = 1.0 / 1.088754
    X = (0.412453 * inv_wx) * rl + (0.35758 * inv_wx) * gl + (0.180423 * inv_wx) * bl
    Y = 0.212671 * rl + 0.71516 * gl + 0.072169 * bl
    Z = (0.019334 * inv_wz) * rl + (0.119193 * inv_wz) * gl + (0.950227 * inv_wz) * bl

    # --- XYZ -> f(XYZ) --------------------------------------------------------
    eps = 6.0 / 29.0
    thr = eps ** 3

    def f(t):
        lin_part = t * (1.0 / (3.0 * eps * eps)) + 4.0 / 29.0
        cbrt_part = jnp.power(jnp.maximum(t, 0.0001), 1.0 / 3.0)
        return jnp.where(t <= thr, lin_part, cbrt_part)

    fx = f(X)
    fy = f(Y)
    fz = f(Z)

    # --- f(XYZ) -> normalized LAB, constants folded ---------------------------
    #   L/100          = 1.16 * fy - 0.16
    #   (a/110 + 1)/2  = (500/220) * (fx - fy) + 0.5
    #   (b/110 + 1)/2  = (200/220) * (fy - fz) + 0.5
    o_ref[0, 0] = 1.16 * fy - 0.16
    o_ref[0, 1] = (500.0 / 220.0) * (fx - fy) + 0.5
    o_ref[0, 2] = (200.0 / 220.0) * (fy - fz) + 0.5


def _choose_row_tile(rows, cols, batch):
    """Pick the row-tile size for a (1, 3, tile, cols) block."""
    # ~3 MiB per input block -> input + output double-buffered ~= 12 MiB,
    # inside v5e's 16 MiB default scoped VMEM (and v6e/v7x limits).
    target = max(8, ((3 << 20) // (3 * cols * 4)) // 8 * 8)
    if rows <= 8:
        return rows  # full second-to-last dim is always legal
    tile = min(target, rows)
    tile = max(8, (tile // 8) * 8)  # multiple of 8 (partial last block is fine)
    # v7x megacore: make sure there are >= 2 parallel grid steps when possible.
    if batch * pl.cdiv(rows, tile) < 2:
        half = pl.cdiv(rows, 2)
        half = max(8, ((half + 7) // 8) * 8)
        if half < rows:
            tile = half
    return tile


def _rgb2lab_4d(x):
    """Run the kernel on a (B, 3, ROWS, COLS) float32 slab layout."""
    B, C, rows, cols = x.shape
    tile = _choose_row_tile(rows, cols, B)
    grid = (B, pl.cdiv(rows, tile))

    return pl.pallas_call(
        _rgb2lab_kernel,
        out_shape=jax.ShapeDtypeStruct((B, C, rows, cols), jnp.float32),
        grid_spec=pltpu.PrefetchScalarGridSpec(
            num_scalar_prefetch=0,
            grid=grid,
            in_specs=[pl.BlockSpec((1, C, tile, cols),
                                   lambda b, t: (b, 0, t, 0))],
            out_specs=pl.BlockSpec((1, C, tile, cols),
                                   lambda b, t: (b, 0, t, 0)),
        ),
        compiler_params=pltpu.CompilerParams(
            dimension_semantics=("parallel", "parallel")),
    )(x)


def rgb2lab(img):
    """img: [B, 3, H, W] float32 (NCHW). Returns [B, 3, H, W] float32 LAB in [0,1]."""
    B, C, H, W = img.shape
    assert C == 3, "RGB2LAB expects 3 input channels"
    N = H * W
    LANES = 128

    if N % LANES == 0:
        # Fast path: reshape (free, no HBM copy) into lane-dense (R, 128) slabs.
        R = N // LANES
        out = _rgb2lab_4d(img.reshape(B, C, R, LANES))
        return out.reshape(B, C, H, W)

    # Ragged path: block the NCHW tensor directly; last dim = full W is legal,
    # trailing partial row-blocks are handled (masked) by Pallas. No pad/slice.
    return _rgb2lab_4d(img)


def _rgb2lab_reference(img):
    """Pure-JAX reference mirroring the PyTorch forward, for validation."""
    le = (img <= 0.04045).astype(jnp.float32)
    gt = (img > 0.04045).astype(jnp.float32)
    lin = img / 12.92 * le + ((jnp.clip(img, 0.0001, None) + 0.055) / 1.055) ** 2.4 * gt

    rgb_to_xyz = jnp.array([[0.412453, 0.212671, 0.019334],
                            [0.35758, 0.71516, 0.119193],
                            [0.180423, 0.072169, 0.950227]], dtype=jnp.float32).T
    xyz = jnp.einsum('bcyx,kc->bkyx', lin, rgb_to_xyz)
    white = jnp.array([0.950456, 1.0, 1.088754], dtype=jnp.float32).reshape(1, 3, 1, 1)
    xyz = xyz * (1.0 / white)

    eps = 6.0 / 29.0
    le2 = (xyz <= eps ** 3).astype(jnp.float32)
    gt2 = (xyz > eps ** 3).astype(jnp.float32)
    fxyz = (xyz / (3.0 * eps ** 2) + 4.0 / 29.0) * le2 + \
           jnp.clip(xyz, 0.0001, None) ** (1.0 / 3.0) * gt2

    fxfyfz_to_lab = jnp.array([[0.0, 500.0, 0.0],
                               [116.0, -500.0, 200.0],
                               [0.0, 0.0, -200.0]], dtype=jnp.float32).T
    lab = jnp.einsum('bcyx,kc->bkyx', fxyz, fxfyfz_to_lab)
    lab = lab - jnp.array([16.0, 0.0, 0.0], dtype=jnp.float32).reshape(1, 3, 1, 1)

    L = lab[:, 0:1] / 100.0
    A = (lab[:, 1:2] / 110.0 + 1.0) / 2.0
    Bc = (lab[:, 2:3] / 110.0 + 1.0) / 2.0
    return jnp.concatenate([L, A, Bc], axis=1)


if __name__ == "__main__":
    # Lane-aligned path: H*W = 256 is a multiple of 128.
    img = jax.random.uniform(jax.random.PRNGKey(0), (2, 3, 16, 16), dtype=jnp.float32)
    out = jax.block_until_ready(rgb2lab(img))
    ref = jax.block_until_ready(_rgb2lab_reference(img))
    np.testing.assert_allclose(np.asarray(out), np.asarray(ref), rtol=1e-4, atol=1e-5)

    # Ragged path: H*W not a multiple of 128 (direct NCHW blocking, no pad/slice).
    img2 = jax.random.uniform(jax.random.PRNGKey(1), (1, 3, 13, 9), dtype=jnp.float32)
    out2 = jax.block_until_ready(rgb2lab(img2))
    ref2 = jax.block_until_ready(_rgb2lab_reference(img2))
    np.testing.assert_allclose(np.asarray(out2), np.asarray(ref2), rtol=1e-4, atol=1e-5)

    print("KERNEL_OK")
</pallas_src>

<mosaic_0001>
module attributes {stable_mosaic.version = 11 : i64} {
  func.func @_rgb2lab_kernel(%arg0: i32, %arg1: i32, %arg2: memref<1x3x2x128xf32, #tpu.memory_space<vmem>>, %arg3: memref<1x3x2x128xf32, #tpu.memory_space<vmem>>) attributes {dimension_semantics = [#tpu.dimension_semantics<parallel>, #tpu.dimension_semantics<parallel>], iteration_bounds = array<i64: 2, 1>, scalar_prefetch = 0 : i64, scratch_operands = 0 : i64, tpu.core_type = #tpu.core_type<tc>, window_params = [{transform_indices = @transform_0, window_bounds = array<i64: 1, 3, 2, 128>}, {transform_indices = @transform_1, window_bounds = array<i64: 1, 3, 2, 128>}]} {
    %c0 = arith.constant 0 : index
    %c0_0 = arith.constant 0 : index
    %c0_1 = arith.constant 0 : index
    %c0_2 = arith.constant 0 : index
    %0 = vector.load %arg2[%c0, %c0_0, %c0_1, %c0_2] : memref<1x3x2x128xf32, #tpu.memory_space<vmem>>, vector<1x1x2x128xf32>
    %1 = vector.shape_cast %0 : vector<1x1x2x128xf32> to vector<2x128xf32>
    %c0_3 = arith.constant 0 : index
    %c1 = arith.constant 1 : index
    %c0_4 = arith.constant 0 : index
    %c0_5 = arith.constant 0 : index
    %2 = vector.load %arg2[%c0_3, %c1, %c0_4, %c0_5] : memref<1x3x2x128xf32, #tpu.memory_space<vmem>>, vector<1x1x2x128xf32>
    %3 = vector.shape_cast %2 : vector<1x1x2x128xf32> to vector<2x128xf32>
    %c0_6 = arith.constant 0 : index
    %c2 = arith.constant 2 : index
    %c0_7 = arith.constant 0 : index
    %c0_8 = arith.constant 0 : index
    %4 = vector.load %arg2[%c0_6, %c2, %c0_7, %c0_8] : memref<1x3x2x128xf32, #tpu.memory_space<vmem>>, vector<1x1x2x128xf32>
    %5 = vector.shape_cast %4 : vector<1x1x2x128xf32> to vector<2x128xf32>
    %cst = arith.constant 9.99999974E-5 : f32
    %6 = vector.broadcast %cst : f32 to vector<2x128xf32>
    %7 = arith.maximumf %1, %6 : vector<2x128xf32>
    %cst_9 = arith.constant 5.500000e-02 : f32
    %8 = vector.broadcast %cst_9 : f32 to vector<2x128xf32>
    %9 = arith.addf %7, %8 : vector<2x128xf32>
    %cst_10 = arith.constant 0.947867274 : f32
    %10 = vector.broadcast %cst_10 : f32 to vector<2x128xf32>
    %11 = arith.mulf %9, %10 : vector<2x128xf32>
    %cst_11 = arith.constant 2.400000e+00 : f32
    %12 = vector.broadcast %cst_11 : f32 to vector<2x128xf32>
    %13 = math.powf %11, %12 : vector<2x128xf32>
    %cst_12 = arith.constant 4.045000e-02 : f32
    %14 = vector.broadcast %cst_12 : f32 to vector<2x128xf32>
    %15 = arith.cmpf ole, %1, %14 : vector<2x128xf32>
    %cst_13 = arith.constant 0.0773993805 : f32
    %16 = vector.broadcast %cst_13 : f32 to vector<2x128xf32>
    %17 = arith.mulf %1, %16 : vector<2x128xf32>
    %18 = arith.select %15, %17, %13 : vector<2x128xi1>, vector<2x128xf32>
    %cst_14 = arith.constant 9.99999974E-5 : f32
    %19 = vector.broadcast %cst_14 : f32 to vector<2x128xf32>
    %20 = arith.maximumf %3, %19 : vector<2x128xf32>
    %cst_15 = arith.constant 5.500000e-02 : f32
    %21 = vector.broadcast %cst_15 : f32 to vector<2x128xf32>
    %22 = arith.addf %20, %21 : vector<2x128xf32>
    %cst_16 = arith.constant 0.947867274 : f32
    %23 = vector.broadcast %cst_16 : f32 to vector<2x128xf32>
    %24 = arith.mulf %22, %23 : vector<2x128xf32>
    %cst_17 = arith.constant 2.400000e+00 : f32
    %25 = vector.broadcast %cst_17 : f32 to vector<2x128xf32>
    %26 = math.powf %24, %25 : vector<2x128xf32>
    %cst_18 = arith.constant 4.045000e-02 : f32
    %27 = vector.broadcast %cst_18 : f32 to vector<2x128xf32>
    %28 = arith.cmpf ole, %3, %27 : vector<2x128xf32>
    %cst_19 = arith.constant 0.0773993805 : f32
    %29 = vector.broadcast %cst_19 : f32 to vector<2x128xf32>
    %30 = arith.mulf %3, %29 : vector<2x128xf32>
    %31 = arith.select %28, %30, %26 : vector<2x128xi1>, vector<2x128xf32>
    %cst_20 = arith.constant 9.99999974E-5 : f32
    %32 = vector.broadcast %cst_20 : f32 to vector<2x128xf32>
    %33 = arith.maximumf %5, %32 : vector<2x128xf32>
    %cst_21 = arith.constant 5.500000e-02 : f32
    %34 = vector.broadcast %cst_21 : f32 to vector<2x128xf32>
    %35 = arith.addf %33, %34 : vector<2x128xf32>
    %cst_22 = arith.constant 0.947867274 : f32
    %36 = vector.broadcast %cst_22 : f32 to vector<2x128xf32>
    %37 = arith.mulf %35, %36 : vector<2x128xf32>
    %cst_23 = arith.constant 2.400000e+00 : f32
    %38 = vector.broadcast %cst_23 : f32 to vector<2x128xf32>
    %39 = math.powf %37, %38 : vector<2x128xf32>
    %cst_24 = arith.constant 4.045000e-02 : f32
    %40 = vector.broadcast %cst_24 : f32 to vector<2x128xf32>
    %41 = arith.cmpf ole, %5, %40 : vector<2x128xf32>
    %cst_25 = arith.constant 0.0773993805 : f32
    %42 = vector.broadcast %cst_25 : f32 to vector<2x128xf32>
    %43 = arith.mulf %5, %42 : vector<2x128xf32>
    %44 = arith.select %41, %43, %39 : vector<2x128xi1>, vector<2x128xf32>
    %cst_26 = arith.constant 0.433952749 : f32
    %45 = vector.broadcast %cst_26 : f32 to vector<2x128xf32>
    %46 = arith.mulf %45, %18 : vector<2x128xf32>
    %cst_27 = arith.constant 0.376219422 : f32
    %47 = vector.broadcast %cst_27 : f32 to vector<2x128xf32>
    %48 = arith.mulf %47, %31 : vector<2x128xf32>
    %49 = arith.addf %46, %48 : vector<2x128xf32>
    %cst_28 = arith.constant 0.18982783 : f32
    %50 = vector.broadcast %cst_28 : f32 to vector<2x128xf32>
    %51 = arith.mulf %50, %44 : vector<2x128xf32>
    %52 = arith.addf %49, %51 : vector<2x128xf32>
    %cst_29 = arith.constant 2.126710e-01 : f32
    %53 = vector.broadcast %cst_29 : f32 to vector<2x128xf32>
    %54 = arith.mulf %53, %18 : vector<2x128xf32>
    %cst_30 = arith.constant 7.151600e-01 : f32
    %55 = vector.broadcast %cst_30 : f32 to vector<2x128xf32>
    %56 = arith.mulf %55, %31 : vector<2x128xf32>
    %57 = arith.addf %54, %56 : vector<2x128xf32>
    %cst_31 = arith.constant 7.216900e-02 : f32
    %58 = vector.broadcast %cst_31 : f32 to vector<2x128xf32>
    %59 = arith.mulf %58, %44 : vector<2x128xf32>
    %60 = arith.addf %57, %59 : vector<2x128xf32>
    %cst_32 = arith.constant 0.017757915 : f32
    %61 = vector.broadcast %cst_32 : f32 to vector<2x128xf32>
    %62 = arith.mulf %61, %18 : vector<2x128xf32>
    %cst_33 = arith.constant 0.109476522 : f32
    %63 = vector.broadcast %cst_33 : f32 to vector<2x128xf32>
    %64 = arith.mulf %63, %31 : vector<2x128xf32>
    %65 = arith.addf %62, %64 : vector<2x128xf32>
    %cst_34 = arith.constant 0.872765541 : f32
    %66 = vector.broadcast %cst_34 : f32 to vector<2x128xf32>
    %67 = arith.mulf %66, %44 : vector<2x128xf32>
    %68 = arith.addf %65, %67 : vector<2x128xf32>
    %cst_35 = arith.constant 7.7870369 : f32
    %69 = vector.broadcast %cst_35 : f32 to vector<2x128xf32>
    %70 = arith.mulf %52, %69 : vector<2x128xf32>
    %cst_36 = arith.constant 0.137931034 : f32
    %71 = vector.broadcast %cst_36 : f32 to vector<2x128xf32>
    %72 = arith.addf %70, %71 : vector<2x128xf32>
    %cst_37 = arith.constant 9.99999974E-5 : f32
    %73 = vector.broadcast %cst_37 : f32 to vector<2x128xf32>
    %74 = arith.maximumf %52, %73 : vector<2x128xf32>
    %cst_38 = arith.constant 0.333333343 : f32
    %75 = vector.broadcast %cst_38 : f32 to vector<2x128xf32>
    %76 = math.powf %74, %75 : vector<2x128xf32>
    %cst_39 = arith.constant 0.00885645207 : f32
    %77 = vector.broadcast %cst_39 : f32 to vector<2x128xf32>
    %78 = arith.cmpf ole, %52, %77 : vector<2x128xf32>
    %79 = arith.select %78, %72, %76 : vector<2x128xi1>, vector<2x128xf32>
    %cst_40 = arith.constant 7.7870369 : f32
    %80 = vector.broadcast %cst_40 : f32 to vector<2x128xf32>
    %81 = arith.mulf %60, %80 : vector<2x128xf32>
    %cst_41 = arith.constant 0.137931034 : f32
    %82 = vector.broadcast %cst_41 : f32 to vector<2x128xf32>
    %83 = arith.addf %81, %82 : vector<2x128xf32>
    %cst_42 = arith.constant 9.99999974E-5 : f32
    %84 = vector.broadcast %cst_42 : f32 to vector<2x128xf32>
    %85 = arith.maximumf %60, %84 : vector<2x128xf32>
    %cst_43 = arith.constant 0.333333343 : f32
    %86 = vector.broadcast %cst_43 : f32 to vector<2x128xf32>
    %87 = math.powf %85, %86 : vector<2x128xf32>
    %cst_44 = arith.constant 0.00885645207 : f32
    %88 = vector.broadcast %cst_44 : f32 to vector<2x128xf32>
    %89 = arith.cmpf ole, %60, %88 : vector<2x128xf32>
    %90 = arith.select %89, %83, %87 : vector<2x128xi1>, vector<2x128xf32>
    %cst_45 = arith.constant 7.7870369 : f32
    %91 = vector.broadcast %cst_45 : f32 to vector<2x128xf32>
    %92 = arith.mulf %68, %91 : vector<2x128xf32>
    %cst_46 = arith.constant 0.137931034 : f32
    %93 = vector.broadcast %cst_46 : f32 to vector<2x128xf32>
    %94 = arith.addf %92, %93 : vector<2x128xf32>
    %cst_47 = arith.constant 9.99999974E-5 : f32
    %95 = vector.broadcast %cst_47 : f32 to vector<2x128xf32>
    %96 = arith.maximumf %68, %95 : vector<2x128xf32>
    %cst_48 = arith.constant 0.333333343 : f32
    %97 = vector.broadcast %cst_48 : f32 to vector<2x128xf32>
    %98 = math.powf %96, %97 : vector<2x128xf32>
    %cst_49 = arith.constant 0.00885645207 : f32
    %99 = vector.broadcast %cst_49 : f32 to vector<2x128xf32>
    %100 = arith.cmpf ole, %68, %99 : vector<2x128xf32>
    %101 = arith.select %100, %94, %98 : vector<2x128xi1>, vector<2x128xf32>
    %cst_50 = arith.constant 1.160000e+00 : f32
    %102 = vector.broadcast %cst_50 : f32 to vector<2x128xf32>
    %103 = arith.mulf %102, %90 : vector<2x128xf32>
    %cst_51 = arith.constant 1.600000e-01 : f32
    %104 = vector.broadcast %cst_51 : f32 to vector<2x128xf32>
    %105 = arith.subf %103, %104 : vector<2x128xf32>
    %c0_52 = arith.constant 0 : index
    %c0_53 = arith.constant 0 : index
    %c0_54 = arith.constant 0 : index
    %c0_55 = arith.constant 0 : index
    %106 = vector.load %arg3[%c0_52, %c0_53, %c0_54, %c0_55] : memref<1x3x2x128xf32, #tpu.memory_space<vmem>>, vector<1x1x2x128xf32>
    %107 = vector.shape_cast %106 : vector<1x1x2x128xf32> to vector<2x128xf32>
    %108 = vector.shape_cast %105 : vector<2x128xf32> to vector<1x1x2x128xf32>
    tpu.vector_store %arg3[%c0_52, %c0_53, %c0_54, %c0_55], %108 {strides = array<i32>} : memref<1x3x2x128xf32, #tpu.memory_space<vmem>>, vector<1x1x2x128xf32>,
    %109 = arith.subf %79, %90 : vector<2x128xf32>
    %cst_56 = arith.constant 2.27272725 : f32
    %110 = vector.broadcast %cst_56 : f32 to vector<2x128xf32>
    %111 = arith.mulf %110, %109 : vector<2x128xf32>
    %cst_57 = arith.constant 5.000000e-01 : f32
    %112 = vector.broadcast %cst_57 : f32 to vector<2x128xf32>
    %113 = arith.addf %111, %112 : vector<2x128xf32>
    %c0_58 = arith.constant 0 : index
    %c1_59 = arith.constant 1 : index
    %c0_60 = arith.constant 0 : index
    %c0_61 = arith.constant 0 : index
    %114 = vector.load %arg3[%c0_58, %c1_59, %c0_60, %c0_61] : memref<1x3x2x128xf32, #tpu.memory_space<vmem>>, vector<1x1x2x128xf32>
    %115 = vector.shape_cast %114 : vector<1x1x2x128xf32> to vector<2x128xf32>
    %116 = vector.shape_cast %113 : vector<2x128xf32> to vector<1x1x2x128xf32>
    tpu.vector_store %arg3[%c0_58, %c1_59, %c0_60, %c0_61], %116 {strides = array<i32>} : memref<1x3x2x128xf32, #tpu.memory_space<vmem>>, vector<1x1x2x128xf32>,
    %117 = arith.subf %90, %101 : vector<2x128xf32>
    %cst_62 = arith.constant 0.909090936 : f32
    %118 = vector.broadcast %cst_62 : f32 to vector<2x128xf32>
    %119 = arith.mulf %118, %117 : vector<2x128xf32>
    %cst_63 = arith.constant 5.000000e-01 : f32
    %120 = vector.broadcast %cst_63 : f32 to vector<2x128xf32>
    %121 = arith.addf %119, %120 : vector<2x128xf32>
    %c0_64 = arith.constant 0 : index
    %c2_65 = arith.constant 2 : index
    %c0_66 = arith.constant 0 : index
    %c0_67 = arith.constant 0 : index
    %122 = vector.load %arg3[%c0_64, %c2_65, %c0_66, %c0_67] : memref<1x3x2x128xf32, #tpu.memory_space<vmem>>, vector<1x1x2x128xf32>
    %123 = vector.shape_cast %122 : vector<1x1x2x128xf32> to vector<2x128xf32>
    %124 = vector.shape_cast %121 : vector<2x128xf32> to vector<1x1x2x128xf32>
    tpu.vector_store %arg3[%c0_64, %c2_65, %c0_66, %c0_67], %124 {strides = array<i32>} : memref<1x3x2x128xf32, #tpu.memory_space<vmem>>, vector<1x1x2x128xf32>,
    return
  }
  func.func @transform_0(%arg0: i32, %arg1: i32) -> (i32, i32, i32, i32) {
    %c0_i32 = arith.constant 0 : i32
    %c0_i32_0 = arith.constant 0 : i32
    %c0_i32_1 = arith.constant 0 : i32
    return %arg0, %c0_i32, %arg1, %c0_i32_0 : i32, i32, i32, i32
  }
  func.func @transform_1(%arg0: i32, %arg1: i32) -> (i32, i32, i32, i32) {
    %c0_i32 = arith.constant 0 : i32
    %c0_i32_0 = arith.constant 0 : i32
    %c0_i32_1 = arith.constant 0 : i32
    return %arg0, %c0_i32, %arg1, %c0_i32_0 : i32, i32, i32, i32
  }
}

</mosaic_0001>

<llo_original>
// kernel: tpu_custom_call.1
$region0: #{tpu_custom_call.1}
  #allocation0 [shape = 'u32[]', space=smem, size = 0x4, offset = 0x4, fixed_abs, tag = 'smem constant byte address 0x4 - core index']
  #allocation1 [shape = 'u32[144,128]{1,0:T(1,128)}', space=vmem, size = 0x12000, scoped, tag = 'internal scratch']
  %s0 = inlined_call_operand.hbm [shape: f32[2,3,2,128], index: 0, kind: input, shape index: {}]
  %s1 = inlined_call_operand.hbm [shape: f32[2,3,2,128], index: 1, kind: output, shape index: {}]
  %s2 = sld [smem:[#allocation0]]
  $region41: #{tpu_custom_call.1} parent=0
    _
  %s4 = ssub.s32 1, %s2
  %s5 = scalar_select 0, %s4, %s2
  $region1: #{tpu_custom_call.1} parent=0
    #allocation2 [shape = 'u8[6144]{0}', space=vmem, size = 0x1800, scoped, tag = 'input window, operand 0']
    #allocation3 [shape = 's32[2]{0}', space=sflag, size = 0x8, scoped, tag = 'scoped memory for tpu_custom_call.1']
    #allocation4 [shape = 's32[2]{0}', space=sflag, size = 0x8, scoped, tag = 'scoped memory for tpu_custom_call.1']
    #allocation5 [shape = 'u8[6144]{0}', space=vmem, size = 0x1800, scoped, tag = 'output window, operand 0']
    %6 = vsyncpa [#allocation3], 0
    %s7 = scalar_lea.sflag [#allocation3], 1
    %8 = vsyncpa %s7, 0
    %9 = vsyncpa [#allocation4], 0
    %s10 = scalar_lea.sflag [#allocation4], 1
    %11 = vsyncpa %s10, 0
    loop: start=0, step=1, limit=4
    $region2: #{tpu_custom_call.1} parent=1 // loop_pre_header
      _
    $region3: #{tpu_custom_call.1} parent=1 // loop_header
      %s13 = sphi 0, %s17
      %p14 = scmp.ge.s32.totalorder %s13, 4
      %s20 = sphi 0, %s32
      %s21 = sphi 0, %s28
      %s22 = sphi 0, %s20
      %s23 = sphi 0, %s21
      %s24 = sphi 0, %s22
      %s25 = sphi 0, %s23
      %s37 = sphi 0, %s39
      %s40 = sphi 0, %s37
      %s41 = sphi 0, %s40
      %s57 = sphi 0, %s41
      %s65 = sphi 0, %s67
      %s68 = sphi 0, %s65
      %s69 = sphi 0, %s68
      %s85 = sphi 0, %s69
    $region4: #{tpu_custom_call.1} parent=1 // loop_header_branch
      %16 = sbr.rel (%p14) target = $region8
    $region5: #{tpu_custom_call.1} parent=1 // loop_body
      %s18 = ssub.s32 %s13, 1
      %s19 = ssub.s32 %s13, 2
      %s26 = sadd.s32 1, %s21
      %p27 = scmp.ge.s32.totalorder %s26, 1
      %s28 = scalar_select %p27, 0, %s26
      %s29 = sadd.s32 1, %s20
      %s30 = scalar_select %p27, %s29, %s20
      %p31 = scmp.ge.s32.totalorder %s30, 2
      %s32 = scalar_select %p31, 0, %s30
      %s33 = ssub.s32 %s20, %s32
      %s34 = ssub.s32 %s21, %s28
      %s35 = sor.u32 %s33, %s34
      %p36 = scmp.eq.s32.totalorder %s35, 0
      %s38 = sadd.s32 %s37, 1
      %s39 = scalar_select %p36, %s37, %s38
      %p42 = pneg %p36
      %p43 = scmp.eq.s32.totalorder %s13, 1
      %p44 = por %p42, %p43
      %p45 = scmp.ne.s32.totalorder %s37, %s40
      %p46 = scmp.eq.s32.totalorder %s13, 0
      %p47 = por %p45, %p46
      %p48 = scmp.ne.s32.totalorder %s37, %s40
      %p49 = scmp.eq.s32.totalorder %s18, 1
      %p50 = por %p48, %p49
      %p51 = scmp.ne.s32.totalorder %s40, %s41
      %p52 = scmp.eq.s32.totalorder %s18, 0
      %p53 = por %p51, %p52
      %p54 = scmp.ne.s32.totalorder %s40, %s41
      %p55 = scmp.eq.s32.totalorder %s19, 1
      %p56 = por %p54, %p55
      %p58 = scmp.ne.s32.totalorder %s41, %s57
      %p59 = scmp.eq.s32.totalorder %s19, 0
      %p60 = por %p58, %p59
      %s61 = ssub.s32 %s20, %s32
      %s62 = ssub.s32 %s21, %s28
      %s63 = sor.u32 %s61, %s62
      %p64 = scmp.eq.s32.totalorder %s63, 0
      %s66 = sadd.s32 %s65, 1
      %s67 = scalar_select %p64, %s65, %s66
      %p70 = pneg %p64
      %p71 = scmp.eq.s32.totalorder %s13, 1
      %p72 = por %p70, %p71
      %p73 = scmp.ne.s32.totalorder %s65, %s68
      %p74 = scmp.eq.s32.totalorder %s13, 0
      %p75 = por %p73, %p74
      %p76 = scmp.ne.s32.totalorder %s65, %s68
      %p77 = scmp.eq.s32.totalorder %s18, 1
      %p78 = por %p76, %p77
      %p79 = scmp.ne.s32.totalorder %s68, %s69
      %p80 = scmp.eq.s32.totalorder %s18, 0
      %p81 = por %p79, %p80
      %p82 = scmp.ne.s32.totalorder %s68, %s69
      %p83 = scmp.eq.s32.totalorder %s19, 1
      %p84 = por %p82, %p83
      %p86 = scmp.ne.s32.totalorder %s69, %s85
      %p87 = scmp.eq.s32.totalorder %s19, 0
      %p88 = por %p86, %p87
      %p89 = scmp.le.s32.totalorder 1, %s13
      %p90 = scmp.lt.s32.totalorder %s13, 3
      %p91 = pnand %p89, %p90
      %p92 = pneg %p91
      // Predicated region
      $region9: #{tpu_custom_call.1} parent=5 // pred_check
        _
      $region10: #{tpu_custom_call.1} parent=5 // pred_check_branch
        %94 = sbr.rel (%p91) target = $region12
      $region11: #{tpu_custom_call.1} parent=5 // pred_region
        %s95 = ssub.s32 %s13, 1
      $region12: #{tpu_custom_call.1} parent=5 // pred_fallthru
        _
      %p96 = scmp.lt.s32.totalorder %s13, 2
      // Predicated region
      $region13: #{tpu_custom_call.1} parent=5 // pred_check
        %p97 = pneg %p96
      $region14: #{tpu_custom_call.1} parent=5 // pred_check_branch
        %99 = sbr.rel (%p97) target = $region16
      $region15: #{tpu_custom_call.1} parent=5 // pred_region
        // Predicated region
        $region17: #{tpu_custom_call.1} parent=15 // pred_check
          %p100 = pneg %p47
        $region18: #{tpu_custom_call.1} parent=15 // pred_check_branch
          %102 = sbr.rel (%p100) target = $region20
        $region19: #{tpu_custom_call.1} parent=15 // pred_region
          %s103 = sand.u32 %s37, 1
          %s104 = scalar_lea.sflag [#allocation3], %s103
          %s105 = sand.u32 %s37, 1
          %s106 = smul.addr %s105, 6
          %s107 = scalar_lea.vmem [#allocation2], %s106
          %s109 = ssub.s32 96, 96
          %110 = vsyncadd %s104, %s109
          %s111 = smul.addr %s20, 3
          %s112 = sadd.s32 %s21, %s111
          %s113 = smul.addr %s112, 32
          %s114 = scalar_lea.hbm %s0, %s113
          %s115 = sshll.u32 %s107, 4
          %s116 = int_to_ptr.vmem [resolvable:$true] %s115
          %121 = dma.hbm_to_vmem [thread:$0]  %s114, 96, %s116, %s104, 32, 32, 2
        $region20: #{tpu_custom_call.1} parent=15 // pred_fallthru
          _
      $region16: #{tpu_custom_call.1} parent=5 // pred_fallthru
        _
      %p122 = scmp.le.s32.totalorder 1, %s13
      %p123 = scmp.lt.s32.totalorder %s13, 3
      %p124 = pnand %p122, %p123
      %p125 = pneg %p124
      // Predicated region
      $region21: #{tpu_custom_call.1} parent=5 // pred_check
        _
      $region22: #{tpu_custom_call.1} parent=5 // pred_check_branch
        %127 = sbr.rel (%p124) target = $region24
      $region23: #{tpu_custom_call.1} parent=5 // pred_region
        %s128 = ssub.s32 %s13, 1
        %s129 = sand.u32 %s40, 1
        %s130 = scalar_lea.sflag [#allocation3], %s129
        %s131 = sand.u32 %s40, 1
        %s132 = smul.addr %s131, 6
        %s133 = scalar_lea.vmem [#allocation2], %s132
        // Predicated region
        $region25: #{tpu_custom_call.1} parent=23 // pred_check
          %p134 = pneg %p53
        $region26: #{tpu_custom_call.1} parent=23 // pred_check_branch
          %136 = sbr.rel (%p134) target = $region28
        $region27: #{tpu_custom_call.1} parent=23 // pred_region
          %137 = dma.done %s130, 96
        $region28: #{tpu_custom_call.1} parent=23 // pred_fallthru
          _
        %s138 = sand.u32 %s40, 1
        %s139 = scalar_lea.sflag [#allocation3], %s138
        %s140 = sand.u32 %s40, 1
        %s141 = smul.addr %s140, 6
        %s142 = scalar_lea.vmem [#allocation2], %s141
        %p143 = pneg %p53
        %p144 = pneg %p50
        %p145 = pneg %p81
        %p146 = pneg %p78
        %s147 = sand.u32 %s68, 1
        %s148 = scalar_lea.sflag [#allocation4], %s147
        %s149 = sand.u32 %s68, 1
        %s150 = smul.addr %s149, 6
        %s151 = scalar_lea.vmem [#allocation5], %s150
        %v152 = vld [vmem:[%s133] sm:$0x3]
        %s153 = scalar_lea.vmem %s133, 2 [#allocation2]
        %v154 = vld [vmem:[%s153] sm:$0x3]
        %s155 = scalar_lea.vmem %s133, 4 [#allocation2]
        %v156 = vld [vmem:[%s155] sm:$0x3]
        %v157 = vmax.f32 %v152, 0.0001
        %v158 = vadd.f32 %v157, 0.055
        %v159 = vmul.f32 %v158, 0.9478673
        %v160 = vpow.f32 %v159, 2.4
        %vm161 = vcmp.le.f32.partialorder %v152, 0.04045
        %v162 = vmul.f32 %v152, 0.07739938
        %v163 = vsel %vm161, %v162, %v160
        %v164 = vmax.f32 %v154, 0.0001
        %v165 = vadd.f32 %v164, 0.055
        %v166 = vmul.f32 %v165, 0.9478673
        %v167 = vpow.f32 %v166, 2.4
        %vm168 = vcmp.le.f32.partialorder %v154, 0.04045
        %v169 = vmul.f32 %v154, 0.07739938
        %v170 = vsel %vm168, %v169, %v167
        %v171 = vmax.f32 %v156, 0.0001
        %v172 = vadd.f32 %v171, 0.055
        %v173 = vmul.f32 %v172, 0.9478673
        %v174 = vpow.f32 %v173, 2.4
        %vm175 = vcmp.le.f32.partialorder %v156, 0.04045
        %v176 = vmul.f32 %v156, 0.07739938
        %v177 = vsel %vm175, %v176, %v174
        %v178 = vmul.f32 %v163, 0.43395275
        %v179 = vmul.f32 %v170, 0.37621942
        %v180 = vadd.f32 %v178, %v179
        %v181 = vmul.f32 %v177, 0.18982783
        %v182 = vadd.f32 %v180, %v181
        %v183 = vmul.f32 %v163, 0.212671
        %v184 = vmul.f32 %v170, 0.71516
        %v185 = vadd.f32 %v183, %v184
        %v186 = vmul.f32 %v177, 0.072169
        %v187 = vadd.f32 %v185, %v186
        %v188 = vmul.f32 %v163, 0.017757915
        %v189 = vmul.f32 %v170, 0.10947652
        %v190 = vadd.f32 %v188, %v189
        %v191 = vmul.f32 %v177, 0.87276554
        %v192 = vadd.f32 %v190, %v191
        %v193 = vmul.f32 %v182, 7.787037
        %v194 = vadd.f32 %v193, 0.13793103
        %v195 = vmax.f32 %v182, 0.0001
        %v196 = vpow.f32 %v195, 0.33333334
        %vm197 = vcmp.le.f32.partialorder %v182, 0.008856452
        %v198 = vsel %vm197, %v194, %v196
        %v199 = vmul.f32 %v187, 7.787037
        %v200 = vadd.f32 %v199, 0.13793103
        %v201 = vmax.f32 %v187, 0.0001
        %v202 = vpow.f32 %v201, 0.33333334
        %vm203 = vcmp.le.f32.partialorder %v187, 0.008856452
        %v204 = vsel %vm203, %v200, %v202
        %v205 = vmul.f32 %v192, 7.787037
        %v206 = vadd.f32 %v205, 0.13793103
        %v207 = vmax.f32 %v192, 0.0001
        %v208 = vpow.f32 %v207, 0.33333334
        %vm209 = vcmp.le.f32.partialorder %v192, 0.008856452
        %v210 = vsel %vm209, %v206, %v208
        %v211 = vmul.f32 %v204, 1.16
        %v212 = vsub.f32 %v211, 0.16
        %213 = vst [vmem:[%s151] sm:$0x3] %v212
        %v214 = vsub.f32 %v198, %v204
        %v215 = vmul.f32 %v214, 2.2727273
        %v216 = vadd.f32 %v215, 0.5
        %s217 = scalar_lea.vmem %s151, 2 [#allocation5]
        %218 = vst [vmem:[%s217] sm:$0x3] %v216
        %v219 = vsub.f32 %v204, %v210
        %v220 = vmul.f32 %v219, 0.90909094
        %v221 = vadd.f32 %v220, 0.5
        %s222 = scalar_lea.vmem %s151, 4 [#allocation5]
        %223 = vst [vmem:[%s222] sm:$0x3] %v221
        %s224 = sand.u32 %s68, 1
        %s225 = scalar_lea.sflag [#allocation4], %s224
        %s226 = sand.u32 %s68, 1
        %s227 = smul.addr %s226, 6
        %s228 = scalar_lea.vmem [#allocation5], %s227
        // Predicated region
        $region29: #{tpu_custom_call.1} parent=23 // pred_check
          %p229 = pneg %p78
        $region30: #{tpu_custom_call.1} parent=23 // pred_check_branch
          %231 = sbr.rel (%p229) target = $region32
        $region31: #{tpu_custom_call.1} parent=23 // pred_region
          %s233 = ssub.s32 96, 96
          %234 = vsyncadd %s225, %s233
          %s235 = smul.addr %s22, 3
          %s236 = sadd.s32 %s23, %s235
          %s237 = smul.addr %s236, 32
          %s238 = scalar_lea.hbm %s1, %s237
          %s239 = sshll.u32 %s228, 4
          %s240 = int_to_ptr.vmem [resolvable:$true] %s239
          %245 = dma.vmem_to_hbm [thread:$0]  %s240, 96, %s238, %s225, 32, 32, 2
        $region32: #{tpu_custom_call.1} parent=23 // pred_fallthru
          _
      $region24: #{tpu_custom_call.1} parent=5 // pred_fallthru
        _
      %p246 = scmp.le.s32.totalorder 2, %s13
      // Predicated region
      $region33: #{tpu_custom_call.1} parent=5 // pred_check
        %p247 = pneg %p246
      $region34: #{tpu_custom_call.1} parent=5 // pred_check_branch
        %249 = sbr.rel (%p247) target = $region36
      $region35: #{tpu_custom_call.1} parent=5 // pred_region
        %s250 = ssub.s32 %s13, 2
        // Predicated region
        $region37: #{tpu_custom_call.1} parent=35 // pred_check
          %p251 = pneg %p84
        $region38: #{tpu_custom_call.1} parent=35 // pred_check_branch
          %253 = sbr.rel (%p251) target = $region40
        $region39: #{tpu_custom_call.1} parent=35 // pred_region
          %s254 = sand.u32 %s69, 1
          %s255 = scalar_lea.sflag [#allocation4], %s254
          %s256 = sand.u32 %s69, 1
          %s257 = smul.addr %s256, 6
          %s258 = scalar_lea.vmem [#allocation5], %s257
          %259 = dma.done %s255, 96
        $region40: #{tpu_custom_call.1} parent=35 // pred_fallthru
          _
      $region36: #{tpu_custom_call.1} parent=5 // pred_fallthru
        _
    $region6: #{tpu_custom_call.1} parent=1 // loop_footer
      %s17 = sadd.s32 1, %s13
    $region7: #{tpu_custom_call.1} parent=1 // loop_footer_branch
      %12 = sbr.rel target = $region3
    $region8: #{tpu_custom_call.1} parent=1 // loop_exit
      _
    %260 = vsyncpa [#allocation3], 1
    %s261 = scalar_lea.sflag [#allocation3], 1
    %262 = vsyncpa %s261, 1
    %263 = vsyncpa [#allocation4], 1
    %s264 = scalar_lea.sflag [#allocation4], 1
    %265 = vsyncpa %s264, 1

</llo_original>
